<compile_context>
chip_gen: v5e
topology: v5e:2x2
jax: 0.10.0
libtpu: 0.0.40
codegen_flags: <defaults>
</compile_context>

<pallas_src>
import jax
import jax.numpy as jnp
from jax.experimental import pallas as pl
from jax.experimental.pallas import tpu as pltpu


# ------------------------------------------------------------------ kernel ---
def _lrrnn_step_kernel(z_ref, m_ref, n_ref, h_ref, hz_ref, a_ref, out_ref):
    """One LRRNN transition step on a (dz, lane_tile) slab of latent columns.

    z_ref  : (1, dz, tl)  latent columns (lane-dense)
    m_ref  : (N,  dz)     latent -> neuron weights  (m)
    n_ref  : (dz, N)      neuron -> latent weights  (n * scaling)
    h_ref  : (N,  1)      neuron bias
    hz_ref : (dz, 1)      latent bias
    a_ref  : (dz, 1)      leak / time-constant A
    out_ref: (1, dz, tl)  updated latent columns
    """
    zt = z_ref[0]                                                       # (dz, tl)
    # X = einsum('Nz,BzTK->BNTK', m, z)  ->  m @ z_tile                 (MXU)
    x = jnp.dot(m_ref[...], zt, preferred_element_type=jnp.float32)    # (N, tl)
    # R = relu(X - h)                                                   (VPU)
    r = jnp.maximum(x - h_ref[...], 0.0)                               # (N, tl)
    # einsum('zN,BNTK->BzTK', n*scaling, R)  ->  n @ R                  (MXU)
    proj = jnp.dot(n_ref[...], r, preferred_element_type=jnp.float32)  # (dz, tl)
    out_ref[0] = a_ref[...] * zt + proj + hz_ref[...]


# ----------------------------------------------------------------- wrapper ---
def lrrnn_forward(z, m, n_scaled, h, hz, A, *, lane_tile=512):
    """LRRNN.forward(z, noise_scale=0, u=None).

    Args:
      z        : (B, dz, T, K) float32 latent time series (PyTorch convention)
      m        : (N, dz)  transition.m
      n_scaled : (dz, N)  transition.n * weight_scaler
      h        : (N,)     neuron bias
      hz       : (dz,)    latent bias
      A        : (dz,)    leak (cast_A(AW) diagonal)
      lane_tile: lane-axis tile size (multiple of 128 recommended; clamped to
                 the padded T*K extent).
    Returns:
      z_next   : (B, dz, T, K) float32
    """
    B, dz, T, K = z.shape
    N = m.shape[0]
    TK = T * K

    # Lane tile: a multiple of 128, no larger than the 128-rounded lane extent.
    tk128 = pl.cdiv(TK, 128) * 128
    tl = max(128, min(int(lane_tile), tk128))
    tl = (tl // 128) * 128
    TK_pad = pl.cdiv(TK, tl) * tl
    grid = (B, TK_pad // tl)

    # (B, dz, T, K) -> (B, dz, T*K): pure view, no HBM transpose.
    z3 = z.reshape(B, dz, TK).astype(jnp.float32)
    if TK_pad != TK:
        z3 = jnp.pad(z3, ((0, 0), (0, 0), (0, TK_pad - TK)))

    m32 = m.astype(jnp.float32)                    # (N, dz)  — used as-is, no .T
    n32 = n_scaled.astype(jnp.float32)             # (dz, N)  — used as-is, no .T
    h2 = h.reshape(N, 1).astype(jnp.float32)
    hz2 = hz.reshape(dz, 1).astype(jnp.float32)
    a2 = A.reshape(dz, 1).astype(jnp.float32)

    out3 = pl.pallas_call(
        _lrrnn_step_kernel,
        out_shape=jax.ShapeDtypeStruct((B, dz, TK_pad), jnp.float32),
        grid_spec=pl.GridSpec(
            grid=grid,
            in_specs=[
                pl.BlockSpec((1, dz, tl), lambda b, j: (b, 0, j)),  # z slab (tiled)
                pl.BlockSpec((N, dz), lambda b, j: (0, 0)),         # m     (resident)
                pl.BlockSpec((dz, N), lambda b, j: (0, 0)),         # n*s   (resident)
                pl.BlockSpec((N, 1), lambda b, j: (0, 0)),          # h
                pl.BlockSpec((dz, 1), lambda b, j: (0, 0)),         # hz
                pl.BlockSpec((dz, 1), lambda b, j: (0, 0)),         # A
            ],
            out_specs=pl.BlockSpec((1, dz, tl), lambda b, j: (b, 0, j)),
        ),
        compiler_params=pltpu.CompilerParams(
            dimension_semantics=("parallel", "parallel")),
    )(z3, m32, n32, h2, hz2, a2)

    # Drop lane padding, restore (B, dz, T, K).
    return out3[:, :, :TK].reshape(B, dz, T, K)


# --------------------------------------------------------------- reference ---
def lrrnn_forward_ref(z, m, n_scaled, h, hz, A):
    """Pure-JAX transcription of the PyTorch forward (for verification)."""
    A4 = A.reshape(1, -1, 1, 1)
    h4 = h.reshape(1, -1, 1, 1)
    hz4 = hz.reshape(1, -1, 1, 1)
    X = jnp.einsum('Nz,bzTK->bNTK', m, z)
    R = jnp.maximum(X - h4, 0.0)
    return A4 * z + jnp.einsum('zN,bNTK->bzTK', n_scaled, R) + hz4


# -------------------------------------------------------------------- main ---
if __name__ == "__main__":
    # Small shapes implied by the module: n_trials x dim_z x time_steps x k.
    # T*K = 288 is NOT a multiple of 128 so the padded/multi-tile path is tested.
    B, dz, T, K = 2, 4, 72, 4     # batch, latent rank, time, particles
    dN = 32                       # hidden neurons (dim_N)
    weight_scaler = 1.0
    # TODO(synk): dim_u > 0 input drive (Wu @ u) and noise_scale > 0 stochastic
    # path are not exercised here (forward defaults: u=None, noise_scale=0).

    key = jax.random.PRNGKey(0)
    k_z, k_m, k_n, k_a = jax.random.split(key, 4)

    # Deterministic parameter init (shapes match Transition.__init__ with
    # activation='relu', shared_tau=False, exp_par=False, m_orth=False).
    z0 = jax.random.normal(k_z, (B, dz, T, K), dtype=jnp.float32)
    m = jax.random.uniform(k_m, (dN, dz), minval=-1.0, maxval=1.0,
                           dtype=jnp.float32) / jnp.sqrt(dN)
    n = jax.random.uniform(k_n, (dz, dN), minval=-1.0, maxval=1.0,
                           dtype=jnp.float32) / jnp.sqrt(dN)
    h = jnp.zeros((dN,), dtype=jnp.float32)      # neuron bias (init zeros)
    hz = jnp.zeros((dz,), dtype=jnp.float32)     # latent bias (init zeros)
    A = 0.5 + 0.5 * jax.random.uniform(k_a, (dz,), dtype=jnp.float32)  # leak

    n_scaled = n * weight_scaler
    ref = lrrnn_forward_ref(z0, m, n_scaled, h, hz, A)

    # Multi-tile grid (B, 3) with a padded final lane tile.
    out_small_tile = lrrnn_forward(z0, m, n_scaled, h, hz, A, lane_tile=128)
    out_small_tile = jax.block_until_ready(out_small_tile)
    assert out_small_tile.shape == (B, dz, T, K)
    assert jnp.allclose(out_small_tile, ref, atol=1e-5, rtol=1e-5)

    # Default (large) lane tile: single lane tile per batch row.
    out_default = lrrnn_forward(z0, m, n_scaled, h, hz, A)
    out_default = jax.block_until_ready(out_default)
    assert out_default.shape == (B, dz, T, K)
    assert jnp.allclose(out_default, ref, atol=1e-5, rtol=1e-5)

    print("KERNEL_OK")
</pallas_src>

<mosaic_0001>
module attributes {stable_mosaic.version = 11 : i64} {
  func.func @_lrrnn_step_kernel(%arg0: i32, %arg1: i32, %arg2: memref<1x4x128xf32, #tpu.memory_space<vmem>>, %arg3: memref<32x4xf32, #tpu.memory_space<vmem>>, %arg4: memref<4x32xf32, #tpu.memory_space<vmem>>, %arg5: memref<32x1xf32, #tpu.memory_space<vmem>>, %arg6: memref<4x1xf32, #tpu.memory_space<vmem>>, %arg7: memref<4x1xf32, #tpu.memory_space<vmem>>, %arg8: memref<1x4x128xf32, #tpu.memory_space<vmem>>) attributes {dimension_semantics = [#tpu.dimension_semantics<parallel>, #tpu.dimension_semantics<parallel>], iteration_bounds = array<i64: 2, 3>, scalar_prefetch = 0 : i64, scratch_operands = 0 : i64, tpu.core_type = #tpu.core_type<tc>, window_params = [{transform_indices = @transform_0, window_bounds = array<i64: 1, 4, 128>}, {pipeline_mode = #tpu.pipeline_mode<synchronous>, transform_indices = @transform_1, window_bounds = array<i64: 32, 4>}, {pipeline_mode = #tpu.pipeline_mode<synchronous>, transform_indices = @transform_2, window_bounds = array<i64: 4, 32>}, {pipeline_mode = #tpu.pipeline_mode<synchronous>, transform_indices = @transform_3, window_bounds = array<i64: 32, 1>}, {pipeline_mode = #tpu.pipeline_mode<synchronous>, transform_indices = @transform_4, window_bounds = array<i64: 4, 1>}, {pipeline_mode = #tpu.pipeline_mode<synchronous>, transform_indices = @transform_5, window_bounds = array<i64: 4, 1>}, {transform_indices = @transform_6, window_bounds = array<i64: 1, 4, 128>}]} {
    %c0 = arith.constant 0 : index
    %c0_0 = arith.constant 0 : index
    %c0_1 = arith.constant 0 : index
    %0 = vector.load %arg2[%c0, %c0_0, %c0_1] : memref<1x4x128xf32, #tpu.memory_space<vmem>>, vector<1x4x128xf32>
    %1 = vector.shape_cast %0 : vector<1x4x128xf32> to vector<4x128xf32>
    %c0_2 = arith.constant 0 : index
    %c0_3 = arith.constant 0 : index
    %2 = vector.load %arg3[%c0_2, %c0_3] : memref<32x4xf32, #tpu.memory_space<vmem>>, vector<32x4xf32>
    %cst = arith.constant dense<0.000000e+00> : vector<32x128xf32>
    %3 = tpu.matmul %2, %1, %cst {dimension_numbers = #tpu.dot_dimension_numbers<[1], [0], [0], [1], [0, 0, 1, 1], [], []>} : vector<32x4xf32>, vector<4x128xf32>, vector<32x128xf32> -> vector<32x128xf32>
    %c0_4 = arith.constant 0 : index
    %c0_5 = arith.constant 0 : index
    %4 = vector.load %arg5[%c0_4, %c0_5] : memref<32x1xf32, #tpu.memory_space<vmem>>, vector<32x1xf32>
    %5 = vector.broadcast %4 : vector<32x1xf32> to vector<32x128xf32>
    %6 = arith.subf %3, %5 : vector<32x128xf32>
    %cst_6 = arith.constant 0.000000e+00 : f32
    %7 = vector.broadcast %cst_6 : f32 to vector<32x128xf32>
    %8 = arith.maximumf %6, %7 : vector<32x128xf32>
    %c0_7 = arith.constant 0 : index
    %c0_8 = arith.constant 0 : index
    %9 = vector.load %arg4[%c0_7, %c0_8] : memref<4x32xf32, #tpu.memory_space<vmem>>, vector<4x32xf32>
    %cst_9 = arith.constant dense<0.000000e+00> : vector<4x128xf32>
    %10 = tpu.matmul %9, %8, %cst_9 {dimension_numbers = #tpu.dot_dimension_numbers<[1], [0], [0], [1], [0, 0, 1, 1], [], []>} : vector<4x32xf32>, vector<32x128xf32>, vector<4x128xf32> -> vector<4x128xf32>
    %c0_10 = arith.constant 0 : index
    %c0_11 = arith.constant 0 : index
    %11 = vector.load %arg7[%c0_10, %c0_11] : memref<4x1xf32, #tpu.memory_space<vmem>>, vector<4x1xf32>
    %12 = vector.broadcast %11 : vector<4x1xf32> to vector<4x128xf32>
    %13 = arith.mulf %12, %1 : vector<4x128xf32>
    %14 = arith.addf %13, %10 : vector<4x128xf32>
    %c0_12 = arith.constant 0 : index
    %c0_13 = arith.constant 0 : index
    %15 = vector.load %arg6[%c0_12, %c0_13] : memref<4x1xf32, #tpu.memory_space<vmem>>, vector<4x1xf32>
    %16 = vector.broadcast %15 : vector<4x1xf32> to vector<4x128xf32>
    %17 = arith.addf %14, %16 : vector<4x128xf32>
    %c0_14 = arith.constant 0 : index
    %c0_15 = arith.constant 0 : index
    %c0_16 = arith.constant 0 : index
    %18 = vector.load %arg8[%c0_14, %c0_15, %c0_16] : memref<1x4x128xf32, #tpu.memory_space<vmem>>, vector<1x4x128xf32>
    %19 = vector.shape_cast %18 : vector<1x4x128xf32> to vector<4x128xf32>
    %20 = vector.shape_cast %17 : vector<4x128xf32> to vector<1x4x128xf32>
    tpu.vector_store %arg8[%c0_14, %c0_15, %c0_16], %20 {strides = array<i32>} : memref<1x4x128xf32, #tpu.memory_space<vmem>>, vector<1x4x128xf32>,
    return
  }
  func.func @transform_0(%arg0: i32, %arg1: i32) -> (i32, i32, i32) {
    %c0_i32 = arith.constant 0 : i32
    %c0_i32_0 = arith.constant 0 : i32
    return %arg0, %c0_i32, %arg1 : i32, i32, i32
  }
  func.func @transform_1(%arg0: i32, %arg1: i32) -> (i32, i32) {
    %c0_i32 = arith.constant 0 : i32
    %c0_i32_0 = arith.constant 0 : i32
    %c0_i32_1 = arith.constant 0 : i32
    return %c0_i32, %c0_i32_0 : i32, i32
  }
  func.func @transform_2(%arg0: i32, %arg1: i32) -> (i32, i32) {
    %c0_i32 = arith.constant 0 : i32
    %c0_i32_0 = arith.constant 0 : i32
    %c0_i32_1 = arith.constant 0 : i32
    return %c0_i32, %c0_i32_0 : i32, i32
  }
  func.func @transform_3(%arg0: i32, %arg1: i32) -> (i32, i32) {
    %c0_i32 = arith.constant 0 : i32
    %c0_i32_0 = arith.constant 0 : i32
    %c0_i32_1 = arith.constant 0 : i32
    return %c0_i32, %c0_i32_0 : i32, i32
  }
  func.func @transform_4(%arg0: i32, %arg1: i32) -> (i32, i32) {
    %c0_i32 = arith.constant 0 : i32
    %c0_i32_0 = arith.constant 0 : i32
    %c0_i32_1 = arith.constant 0 : i32
    return %c0_i32, %c0_i32_0 : i32, i32
  }
  func.func @transform_5(%arg0: i32, %arg1: i32) -> (i32, i32) {
    %c0_i32 = arith.constant 0 : i32
    %c0_i32_0 = arith.constant 0 : i32
    %c0_i32_1 = arith.constant 0 : i32
    return %c0_i32, %c0_i32_0 : i32, i32
  }
  func.func @transform_6(%arg0: i32, %arg1: i32) -> (i32, i32, i32) {
    %c0_i32 = arith.constant 0 : i32
    %c0_i32_0 = arith.constant 0 : i32
    return %arg0, %c0_i32, %arg1 : i32, i32, i32
  }
}

</mosaic_0001>

<llo_original>
// kernel: tpu_custom_call.1
$region0: #{tpu_custom_call.1}
  #allocation0 [shape = 'u32[]', space=smem, size = 0x4, offset = 0x4, fixed_abs, tag = 'smem constant byte address 0x4 - core index']
  #allocation1 [shape = 'u32[72,128]{1,0:T(1,128)}', space=vmem, size = 0x9000, scoped, tag = 'internal scratch']
  %s0 = inlined_call_operand.vmem [shape: f32[2,4,384], index: 0, kind: input, shape index: {}]
  %s1 = inlined_call_operand.vmem [shape: f32[32,4], index: 1, kind: input, shape index: {}]
  %s2 = inlined_call_operand.vmem [shape: f32[4,32], index: 2, kind: input, shape index: {}]
  %s3 = inlined_call_operand.vmem [shape: f32[32,1], index: 3, kind: input, shape index: {}]
  %s4 = inlined_call_operand.vmem [shape: f32[4,1], index: 4, kind: input, shape index: {}]
  %s5 = inlined_call_operand.vmem [shape: f32[4,1], index: 5, kind: input, shape index: {}]
  %s6 = inlined_call_operand.hbm [shape: f32[2,4,384], index: 6, kind: output, shape index: {}]
  %s7 = sld [smem:[#allocation0]]
  $region57: #{tpu_custom_call.1} parent=0
    _
  %s9 = ssub.s32 1, %s7
  %s10 = scalar_select 0, %s9, %s7
  $region1: #{tpu_custom_call.1} parent=0
    #allocation2 [shape = 'u8[4096]{0}', space=vmem, size = 0x1000, scoped, tag = 'output window, operand 0']
    #allocation3 [shape = 's32[2]{0}', space=sflag, size = 0x8, scoped, tag = 'scoped memory for tpu_custom_call.1']
    %11 = vsyncpa [#allocation3], 0
    %s12 = scalar_lea.sflag [#allocation3], 1
    %13 = vsyncpa %s12, 0
    loop: start=0, step=1, limit=8
    $region2: #{tpu_custom_call.1} parent=1 // loop_pre_header
      _
    $region3: #{tpu_custom_call.1} parent=1 // loop_header
      %s15 = sphi 0, %s19
      %p16 = scmp.ge.s32.totalorder %s15, 8
      %s22 = sphi 0, %s34
      %s23 = sphi 0, %s30
      %s24 = sphi 0, %s22
      %s25 = sphi 0, %s23
      %s26 = sphi 0, %s24
      %s27 = sphi 0, %s25
      %s39 = sphi 0, %s41
      %s42 = sphi 0, %s39
      %s43 = sphi 0, %s42
      %s59 = sphi 0, %s43
      %s63 = sphi 0, %s63
      %s65 = sphi 0, %s63
      %s66 = sphi 0, %s65
      %s80 = sphi 0, %s66
      %s84 = sphi 0, %s84
      %s86 = sphi 0, %s84
      %s87 = sphi 0, %s86
      %s101 = sphi 0, %s87
      %s105 = sphi 0, %s105
      %s107 = sphi 0, %s105
      %s108 = sphi 0, %s107
      %s122 = sphi 0, %s108
      %s126 = sphi 0, %s126
      %s128 = sphi 0, %s126
      %s129 = sphi 0, %s128
      %s143 = sphi 0, %s129
      %s147 = sphi 0, %s147
      %s149 = sphi 0, %s147
      %s150 = sphi 0, %s149
      %s164 = sphi 0, %s150
      %s172 = sphi 0, %s174
      %s175 = sphi 0, %s172
      %s176 = sphi 0, %s175
      %s192 = sphi 0, %s176
    $region4: #{tpu_custom_call.1} parent=1 // loop_header_branch
      %18 = sbr.rel (%p16) target = $region8
    $region5: #{tpu_custom_call.1} parent=1 // loop_body
      %s20 = ssub.s32 %s15, 1
      %s21 = ssub.s32 %s15, 2
      %s28 = sadd.s32 1, %s23
      %p29 = scmp.ge.s32.totalorder %s28, 3
      %s30 = scalar_select %p29, 0, %s28
      %s31 = sadd.s32 1, %s22
      %s32 = scalar_select %p29, %s31, %s22
      %p33 = scmp.ge.s32.totalorder %s32, 2
      %s34 = scalar_select %p33, 0, %s32
      %s35 = ssub.s32 %s22, %s34
      %s36 = ssub.s32 %s23, %s30
      %s37 = sor.u32 %s35, %s36
      %p38 = scmp.eq.s32.totalorder %s37, 0
      %s40 = sadd.s32 %s39, 1
      %s41 = scalar_select %p38, %s39, %s40
      %p44 = pneg %p38
      %p45 = scmp.eq.s32.totalorder %s15, 5
      %p46 = por %p44, %p45
      %p47 = scmp.ne.s32.totalorder %s39, %s42
      %p48 = scmp.eq.s32.totalorder %s15, 0
      %p49 = por %p47, %p48
      %p50 = scmp.ne.s32.totalorder %s39, %s42
      %p51 = scmp.eq.s32.totalorder %s20, 5
      %p52 = por %p50, %p51
      %p53 = scmp.ne.s32.totalorder %s42, %s43
      %p54 = scmp.eq.s32.totalorder %s20, 0
      %p55 = por %p53, %p54
      %p56 = scmp.ne.s32.totalorder %s42, %s43
      %p57 = scmp.eq.s32.totalorder %s21, 5
      %p58 = por %p56, %p57
      %p60 = scmp.ne.s32.totalorder %s43, %s59
      %p61 = scmp.eq.s32.totalorder %s21, 0
      %p62 = por %p60, %p61
      %s64 = sadd.s32 %s63, 1
      %p67 = scmp.eq.s32.totalorder %s15, 5
      %p68 = scmp.ne.s32.totalorder %s63, %s65
      %p69 = scmp.eq.s32.totalorder %s15, 0
      %p70 = por %p68, %p69
      %p71 = scmp.ne.s32.totalorder %s63, %s65
      %p72 = scmp.eq.s32.totalorder %s20, 5
      %p73 = por %p71, %p72
      %p74 = scmp.ne.s32.totalorder %s65, %s66
      %p75 = scmp.eq.s32.totalorder %s20, 0
      %p76 = por %p74, %p75
      %p77 = scmp.ne.s32.totalorder %s65, %s66
      %p78 = scmp.eq.s32.totalorder %s21, 5
      %p79 = por %p77, %p78
      %p81 = scmp.ne.s32.totalorder %s66, %s80
      %p82 = scmp.eq.s32.totalorder %s21, 0
      %p83 = por %p81, %p82
      %s85 = sadd.s32 %s84, 1
      %p88 = scmp.eq.s32.totalorder %s15, 5
      %p89 = scmp.ne.s32.totalorder %s84, %s86
      %p90 = scmp.eq.s32.totalorder %s15, 0
      %p91 = por %p89, %p90
      %p92 = scmp.ne.s32.totalorder %s84, %s86
      %p93 = scmp.eq.s32.totalorder %s20, 5
      %p94 = por %p92, %p93
      %p95 = scmp.ne.s32.totalorder %s86, %s87
      %p96 = scmp.eq.s32.totalorder %s20, 0
      %p97 = por %p95, %p96
      %p98 = scmp.ne.s32.totalorder %s86, %s87
      %p99 = scmp.eq.s32.totalorder %s21, 5
      %p100 = por %p98, %p99
      %p102 = scmp.ne.s32.totalorder %s87, %s101
      %p103 = scmp.eq.s32.totalorder %s21, 0
      %p104 = por %p102, %p103
      %s106 = sadd.s32 %s105, 1
      %p109 = scmp.eq.s32.totalorder %s15, 5
      %p110 = scmp.ne.s32.totalorder %s105, %s107
      %p111 = scmp.eq.s32.totalorder %s15, 0
      %p112 = por %p110, %p111
      %p113 = scmp.ne.s32.totalorder %s105, %s107
      %p114 = scmp.eq.s32.totalorder %s20, 5
      %p115 = por %p113, %p114
      %p116 = scmp.ne.s32.totalorder %s107, %s108
      %p117 = scmp.eq.s32.totalorder %s20, 0
      %p118 = por %p116, %p117
      %p119 = scmp.ne.s32.totalorder %s107, %s108
      %p120 = scmp.eq.s32.totalorder %s21, 5
      %p121 = por %p119, %p120
      %p123 = scmp.ne.s32.totalorder %s108, %s122
      %p124 = scmp.eq.s32.totalorder %s21, 0
      %p125 = por %p123, %p124
      %s127 = sadd.s32 %s126, 1
      %p130 = scmp.eq.s32.totalorder %s15, 5
      %p131 = scmp.ne.s32.totalorder %s126, %s128
      %p132 = scmp.eq.s32.totalorder %s15, 0
      %p133 = por %p131, %p132
      %p134 = scmp.ne.s32.totalorder %s126, %s128
      %p135 = scmp.eq.s32.totalorder %s20, 5
      %p136 = por %p134, %p135
      %p137 = scmp.ne.s32.totalorder %s128, %s129
      %p138 = scmp.eq.s32.totalorder %s20, 0
      %p139 = por %p137, %p138
      %p140 = scmp.ne.s32.totalorder %s128, %s129
      %p141 = scmp.eq.s32.totalorder %s21, 5
      %p142 = por %p140, %p141
      %p144 = scmp.ne.s32.totalorder %s129, %s143
      %p145 = scmp.eq.s32.totalorder %s21, 0
      %p146 = por %p144, %p145
      %s148 = sadd.s32 %s147, 1
      %p151 = scmp.eq.s32.totalorder %s15, 5
      %p152 = scmp.ne.s32.totalorder %s147, %s149
      %p153 = scmp.eq.s32.totalorder %s15, 0
      %p154 = por %p152, %p153
      %p155 = scmp.ne.s32.totalorder %s147, %s149
      %p156 = scmp.eq.s32.totalorder %s20, 5
      %p157 = por %p155, %p156
      %p158 = scmp.ne.s32.totalorder %s149, %s150
      %p159 = scmp.eq.s32.totalorder %s20, 0
      %p160 = por %p158, %p159
      %p161 = scmp.ne.s32.totalorder %s149, %s150
      %p162 = scmp.eq.s32.totalorder %s21, 5
      %p163 = por %p161, %p162
      %p165 = scmp.ne.s32.totalorder %s150, %s164
      %p166 = scmp.eq.s32.totalorder %s21, 0
      %p167 = por %p165, %p166
      %s168 = ssub.s32 %s22, %s34
      %s169 = ssub.s32 %s23, %s30
      %s170 = sor.u32 %s168, %s169
      %p171 = scmp.eq.s32.totalorder %s170, 0
      %s173 = sadd.s32 %s172, 1
      %s174 = scalar_select %p171, %s172, %s173
      %p177 = pneg %p171
      %p178 = scmp.eq.s32.totalorder %s15, 5
      %p179 = por %p177, %p178
      %p180 = scmp.ne.s32.totalorder %s172, %s175
      %p181 = scmp.eq.s32.totalorder %s15, 0
      %p182 = por %p180, %p181
      %p183 = scmp.ne.s32.totalorder %s172, %s175
      %p184 = scmp.eq.s32.totalorder %s20, 5
      %p185 = por %p183, %p184
      %p186 = scmp.ne.s32.totalorder %s175, %s176
      %p187 = scmp.eq.s32.totalorder %s20, 0
      %p188 = por %p186, %p187
      %p189 = scmp.ne.s32.totalorder %s175, %s176
      %p190 = scmp.eq.s32.totalorder %s21, 5
      %p191 = por %p189, %p190
      %p193 = scmp.ne.s32.totalorder %s176, %s192
      %p194 = scmp.eq.s32.totalorder %s21, 0
      %p195 = por %p193, %p194
      %p196 = scmp.le.s32.totalorder 1, %s15
      %p197 = scmp.lt.s32.totalorder %s15, 7
      %p198 = pnand %p196, %p197
      %p199 = pneg %p198
      // Predicated region
      $region9: #{tpu_custom_call.1} parent=5 // pred_check
        _
      $region10: #{tpu_custom_call.1} parent=5 // pred_check_branch
        %201 = sbr.rel (%p198) target = $region12
      $region11: #{tpu_custom_call.1} parent=5 // pred_region
        %s202 = ssub.s32 %s15, 1
        // Predicated region
        $region13: #{tpu_custom_call.1} parent=11 // pred_check
          %p203 = pneg %p76
        $region14: #{tpu_custom_call.1} parent=11 // pred_check_branch
          %205 = sbr.rel (%p203) target = $region16
        $region15: #{tpu_custom_call.1} parent=11 // pred_region
          _
        $region16: #{tpu_custom_call.1} parent=11 // pred_fallthru
          _
        // Predicated region
        $region17: #{tpu_custom_call.1} parent=11 // pred_check
          %p206 = pneg %p97
        $region18: #{tpu_custom_call.1} parent=11 // pred_check_branch
          %208 = sbr.rel (%p206) target = $region20
        $region19: #{tpu_custom_call.1} parent=11 // pred_region
          _
        $region20: #{tpu_custom_call.1} parent=11 // pred_fallthru
          _
        // Predicated region
        $region21: #{tpu_custom_call.1} parent=11 // pred_check
          %p209 = pneg %p118
        $region22: #{tpu_custom_call.1} parent=11 // pred_check_branch
          %211 = sbr.rel (%p209) target = $region24
        $region23: #{tpu_custom_call.1} parent=11 // pred_region
          _
        $region24: #{tpu_custom_call.1} parent=11 // pred_fallthru
          _
        // Predicated region
        $region25: #{tpu_custom_call.1} parent=11 // pred_check
          %p212 = pneg %p139
        $region26: #{tpu_custom_call.1} parent=11 // pred_check_branch
          %214 = sbr.rel (%p212) target = $region28
        $region27: #{tpu_custom_call.1} parent=11 // pred_region
          _
        $region28: #{tpu_custom_call.1} parent=11 // pred_fallthru
          _
        // Predicated region
        $region29: #{tpu_custom_call.1} parent=11 // pred_check
          %p215 = pneg %p160
        $region30: #{tpu_custom_call.1} parent=11 // pred_check_branch
          %217 = sbr.rel (%p215) target = $region32
        $region31: #{tpu_custom_call.1} parent=11 // pred_region
          _
        $region32: #{tpu_custom_call.1} parent=11 // pred_fallthru
          _
      $region12: #{tpu_custom_call.1} parent=5 // pred_fallthru
        _
      %p218 = scmp.lt.s32.totalorder %s15, 6
      // Predicated region
      $region33: #{tpu_custom_call.1} parent=5 // pred_check
        %p219 = pneg %p218
      $region34: #{tpu_custom_call.1} parent=5 // pred_check_branch
        %221 = sbr.rel (%p219) target = $region36
      $region35: #{tpu_custom_call.1} parent=5 // pred_region
        // Predicated region
        $region37: #{tpu_custom_call.1} parent=35 // pred_check
          %p222 = pneg %p49
        $region38: #{tpu_custom_call.1} parent=35 // pred_check_branch
          %224 = sbr.rel (%p222) target = $region40
        $region39: #{tpu_custom_call.1} parent=35 // pred_region
          %p225 = scmp.lt.s32.totalorder %s22, 1
          %s226 = scalar_select %p225, %s22, 1
          %p227 = scmp.lt.s32.totalorder %s23, 2
          %s228 = scalar_select %p227, %s23, 2
          %s229 = smul.addr %s226, 3
          %s230 = sadd.s32 %s228, %s229
          %s231 = smul.addr %s230, 4
          %s232 = scalar_lea.vmem %s0, %s231
        $region40: #{tpu_custom_call.1} parent=35 // pred_fallthru
          _
      $region36: #{tpu_custom_call.1} parent=5 // pred_fallthru
        _
      %p233 = scmp.le.s32.totalorder 1, %s15
      %p234 = scmp.lt.s32.totalorder %s15, 7
      %p235 = pnand %p233, %p234
      %p236 = pneg %p235
      // Predicated region
      $region41: #{tpu_custom_call.1} parent=5 // pred_check
        _
      $region42: #{tpu_custom_call.1} parent=5 // pred_check_branch
        %238 = sbr.rel (%p235) target = $region44
      $region43: #{tpu_custom_call.1} parent=5 // pred_region
        %s239 = ssub.s32 %s15, 1
        %p240 = scmp.lt.s32.totalorder %s24, 1
        %s241 = scalar_select %p240, %s24, 1
        %p242 = scmp.lt.s32.totalorder %s25, 2
        %s243 = scalar_select %p242, %s25, 2
        %s244 = smul.addr %s241, 3
        %s245 = sadd.s32 %s243, %s244
        %s246 = smul.addr %s245, 4
        %s247 = scalar_lea.vmem %s0, %s246
        %p248 = pneg %p55
        %p249 = pneg %p52
        %p250 = pneg %p76
        %p251 = pneg %p73
        %p252 = pneg %p97
        %p253 = pneg %p94
        %p254 = pneg %p118
        %p255 = pneg %p115
        %p256 = pneg %p139
        %p257 = pneg %p136
        %p258 = pneg %p160
        %p259 = pneg %p157
        %p260 = pneg %p188
        %p261 = pneg %p185
        %s262 = sand.u32 %s175, 1
        %s263 = scalar_lea.sflag [#allocation3], %s262
        %s264 = sand.u32 %s175, 1
        %s265 = smul.addr %s264, 4
        %s266 = scalar_lea.vmem [#allocation2], %s265
        %p267 = scmp.lt.s32.totalorder %s24, 1
        %s268 = scalar_select %p267, %s24, 1
        %p269 = scmp.lt.s32.totalorder %s25, 2
        %s270 = scalar_select %p269, %s25, 2
        %s271 = smul.addr %s268, 3
        %s272 = sadd.s32 %s270, %s271
        %s273 = smul.addr %s272, 4
        %s274 = scalar_lea.vmem %s0, %s273
        %v275 = vld [vmem:[%s274] sm:$0xf]
        %v276 = vld [vmem:[%s1] sm:$0xff]
        %v277 = vld [vmem:[%s1 + $0x8] sm:$0xff]
        %v278 = vld [vmem:[%s1 + $0x10] sm:$0xff]
        %v279 = vld [vmem:[%s1 + $0x18] sm:$0xff]
        %vm280 = vcmask 31744
        %v282 = vsel %vm280, %v276, 0
        %v285 = vsel %vm280, %v277, 0
        %v288 = vsel %vm280, %v278, 0
        %v291 = vsel %vm280, %v279, 0
        %vm293 = vcmask 1043456
        %v295 = vsel %vm293, %v275, 0
        %297 = vmatpush.msra.mxu0 0.0
        %298 = vmatpush.msra.mxu0 0.0
        %299 = vmatpush.msra.mxu0 0.0
        %300 = vmatpush.msra.mxu0 0.0
        %301 = vmatpush.msra.mxu0 0.0
        %302 = vmatpush.msra.mxu0 0.0
        %303 = vmatpush.msra.mxu0 0.0
        %304 = vmatpush.msra.mxu0 0.0
        %305 = vmatpush.msra.mxu0 0.0
        %306 = vmatpush.msra.mxu0 0.0
        %307 = vmatpush.msra.mxu0 0.0
        %308 = vmatpush.msra.mxu0 0.0
        %309 = vmatpush.msra.mxu0 0.0
        %310 = vmatpush.msra.mxu0 0.0
        %311 = vmatpush.msra.mxu0 0.0
        %312 = vmatpush.msra.mxu0 %v295
        %313 = vmatmul.f32.gmra.mxu0 %v282
        %v314 = vpop.f32.mrf.mxu0
        %v315 = vadd.f32 0.0, %v314
        %316 = vmatmul.f32.gmra.mxu0 %v285
        %v317 = vpop.f32.mrf.mxu0
        %v318 = vadd.f32 0.0, %v317
        %319 = vmatmul.f32.gmra.mxu0 %v288
        %v320 = vpop.f32.mrf.mxu0
        %v321 = vadd.f32 0.0, %v320
        %322 = vmatmul.f32.gmra.mxu0 %v291
        %v323 = vpop.f32.mrf.mxu0
        %v324 = vadd.f32 0.0, %v323
        %325 = vdwg.mxu0
        %v326 = vld [vmem:[%s3] sm:$0xff]
        %v327 = vld [vmem:[%s3 + $0x8] sm:$0xff]
        %v328 = vld [vmem:[%s3 + $0x10] sm:$0xff]
        %v329 = vld [vmem:[%s3 + $0x18] sm:$0xff]
        %331 = vset.pattern.permute.xlu0 0
        %332 = vperm.xlu0 %331, %v326
        %v333 = vpop.permute.xlu0 %332
        %336 = vset.pattern.permute.xlu0 0
        %337 = vperm.xlu0 %336, %v327
        %v338 = vpop.permute.xlu0 %337
        %341 = vset.pattern.permute.xlu0 0
        %342 = vperm.xlu0 %341, %v328
        %v343 = vpop.permute.xlu0 %342
        %346 = vset.pattern.permute.xlu0 0
        %347 = vperm.xlu0 %346, %v329
        %v348 = vpop.permute.xlu0 %347
        %v350 = vsub.f32 %v315, %v333
        %v351 = vsub.f32 %v318, %v338
        %v352 = vsub.f32 %v321, %v343
        %v353 = vsub.f32 %v324, %v348
        %v354 = vmax.f32 %v350, 0.0
        %v355 = vmax.f32 %v351, 0.0
        %v356 = vmax.f32 %v352, 0.0
        %v357 = vmax.f32 %v353, 0.0
        %v358 = vld [vmem:[%s2] sm:$0xf]
        %vm359 = vcmask 261120
        %v361 = vsel %vm359, %v358, 0
        %363 = vmatpush.msra.mxu0 0.0
        %364 = vmatpush.msra.mxu0 0.0
        %365 = vmatpush.msra.mxu0 0.0
        %366 = vmatpush.msra.mxu0 0.0
        %367 = vmatpush.msra.mxu0 0.0
        %368 = vmatpush.msra.mxu0 0.0
        %369 = vmatpush.msra.mxu0 0.0
        %370 = vmatpush.msra.mxu0 0.0
        %371 = vmatpush.msra.mxu0 0.0
        %372 = vmatpush.msra.mxu0 0.0
        %373 = vmatpush.msra.mxu0 0.0
        %374 = vmatpush.msra.mxu0 0.0
        %375 = vmatpush.msra.mxu0 %v357
        %376 = vmatpush.msra.mxu0 %v356
        %377 = vmatpush.msra.mxu0 %v355
        %378 = vmatpush.msra.mxu0 %v354
        %379 = vmatmul.f32.gmra.mxu0 %v361
        %v380 = vpop.f32.mrf.mxu0
        %v381 = vadd.f32 0.0, %v380
        %382 = vdwg.mxu0
        %v383 = vld [vmem:[%s5] sm:$0xf]
        %385 = vset.pattern.permute.xlu0 0
        %386 = vperm.xlu0 %385, %v383
        %v387 = vpop.permute.xlu0 %386
        %v389 = vmul.f32 %v387, %v275
        %v390 = vadd.f32 %v389, %v381
        %v391 = vld [vmem:[%s4] sm:$0xf]
        %393 = vset.pattern.permute.xlu0 0
        %394 = vperm.xlu0 %393, %v391
        %v395 = vpop.permute.xlu0 %394
        %v397 = vadd.f32 %v390, %v395
        %398 = vst [vmem:[%s266] sm:$0xf] %v397
        %s399 = sand.u32 %s175, 1
        %s400 = scalar_lea.sflag [#allocation3], %s399
        %s401 = sand.u32 %s175, 1
        %s402 = smul.addr %s401, 4
        %s403 = scalar_lea.vmem [#allocation2], %s402
        // Predicated region
        $region45: #{tpu_custom_call.1} parent=43 // pred_check
          %p404 = pneg %p185
        $region46: #{tpu_custom_call.1} parent=43 // pred_check_branch
          %406 = sbr.rel (%p404) target = $region48
        $region47: #{tpu_custom_call.1} parent=43 // pred_region
          %408 = vsyncadd %s400, 0
          %s409 = smul.addr %s24, 3
          %s410 = sadd.s32 %s25, %s409
          %s411 = smul.addr %s410, 4
          %s412 = scalar_lea.hbm %s6, %s411
          %s414 = sshll.u32 %s403, 4
          %s415 = int_to_ptr.vmem [resolvable:$true] %s414
          %s416 = sshll.u32 %s412, 4
          %s417 = int_to_ptr.hbm [resolvable:$true] %s416
          %419 = dma.vmem_to_hbm [thread:$0]  %s415, 64, %s417, %s400
        $region48: #{tpu_custom_call.1} parent=43 // pred_fallthru
          _
      $region44: #{tpu_custom_call.1} parent=5 // pred_fallthru
        _
      %p420 = scmp.le.s32.totalorder 2, %s15
      // Predicated region
      $region49: #{tpu_custom_call.1} parent=5 // pred_check
        %p421 = pneg %p420
      $region50: #{tpu_custom_call.1} parent=5 // pred_check_branch
        %423 = sbr.rel (%p421) target = $region52
      $region51: #{tpu_custom_call.1} parent=5 // pred_region
        %s424 = ssub.s32 %s15, 2
        // Predicated region
        $region53: #{tpu_custom_call.1} parent=51 // pred_check
          %p425 = pneg %p191
        $region54: #{tpu_custom_call.1} parent=51 // pred_check_branch
          %427 = sbr.rel (%p425) target = $region56
        $region55: #{tpu_custom_call.1} parent=51 // pred_region
          %s428 = sand.u32 %s176, 1
          %s429 = scalar_lea.sflag [#allocation3], %s428
          %s430 = sand.u32 %s176, 1
          %s431 = smul.addr %s430, 4
          %s432 = scalar_lea.vmem [#allocation2], %s431
          %434 = dma.done %s429, 64
        $region56: #{tpu_custom_call.1} parent=51 // pred_fallthru
          _
      $region52: #{tpu_custom_call.1} parent=5 // pred_fallthru
        _
    $region6: #{tpu_custom_call.1} parent=1 // loop_footer
      %s19 = sadd.s32 1, %s15
    $region7: #{tpu_custom_call.1} parent=1 // loop_footer_branch
      %14 = sbr.rel target = $region3
    $region8: #{tpu_custom_call.1} parent=1 // loop_exit
      _
    %435 = vsyncpa [#allocation3], 1
    %s436 = scalar_lea.sflag [#allocation3], 1
    %437 = vsyncpa %s436, 1

</llo_original>
